<compile_context>
chip_gen: v6e
topology: v6e:2x2x1
jax: 0.10.0
libtpu: 0.0.40
codegen_flags: <defaults>
</compile_context>

<pallas_src>
import functools
import math

import jax
import jax.numpy as jnp
from jax.experimental import pallas as pl
from jax.experimental.pallas import tpu as pltpu


def _edl_conv_kernel(x_ref, w_ref, b_ref, o_ref, *, kH, kW, W, Ho, out_tasks):
    """One batch image:  out = act(conv(x, W) + b)  in transposed [O, Ho*W] layout.

    x_ref: (1, C, H*W + kW - 1)  flattened, right-padded image   (bf16)
    w_ref: (kH*kW, O, C)         weight, taps-major              (bf16)
    b_ref: (O, 1)                bias                            (f32)
    o_ref: (1, O, Ho*W)          pre-crop output slab            (f32)
    """
    L = Ho * W

    # Fused im2col: accumulate kH*kW shifted [O,C] @ [C,L] dots (f32 acc).
    acc = None
    for i in range(kH):
        for j in range(kW):
            s = i * W + j                                   # static lane shift
            xs = x_ref[0, :, s:s + L]                       # (C, L)
            w_ij = w_ref[i * kW + j]                        # (O, C)
            d = jnp.dot(w_ij, xs, preferred_element_type=jnp.float32)
            acc = d if acc is None else acc + d

    acc = acc + b_ref[...]                                  # (O, L) + (O, 1)

    # Per-head activations, selected by output-channel (sublane) index:
    #   rows [0, T)    gamma : identity
    #   rows [T, 2T)   nu    : softplus
    #   rows [2T, 3T)  alpha : softplus + 1
    #   rows [3T, 4T)  beta  : softplus
    T = out_tasks
    row = jax.lax.broadcasted_iota(jnp.int32, acc.shape, 0)
    is_gamma = row < T
    is_alpha = (row >= 2 * T) & (row < 3 * T)
    # numerically-stable softplus: max(x,0) + log1p(exp(-|x|)); EUP-slot ops,
    # effectively free under the memory bottleneck.
    sp = jnp.maximum(acc, 0.0) + jnp.log1p(jnp.exp(-jnp.abs(acc)))
    out = jnp.where(is_gamma, acc, sp + is_alpha.astype(acc.dtype))
    o_ref[0] = out.astype(o_ref.dtype)


def conv2d_normal_gamma(x, weight, bias, out_tasks, *, mxu_dtype=jnp.bfloat16):
    """Forward pass of Conv2DNormalGamma.

    x:      [N, C, H, W]  (or [C, H, W], like PyTorch's 3-D branch)
    weight: [4*T, C, kH, kW]
    bias:   [4*T]
    returns [4, N, T, Ho, Wo]  (or [4, T, Ho, Wo] for 3-D input)
    """
    squeeze_batch = x.ndim == 3
    if squeeze_batch:
        x = x[None]

    N, C, H, W = x.shape
    O, Cw, kH, kW = weight.shape
    assert Cw == C and O == 4 * out_tasks
    assert H >= kH and W >= kW
    Ho, Wo = H - kH + 1, W - kW + 1
    L = Ho * W                       # pre-crop output width (lane-dense)
    HWp = H * W + (kW - 1)           # padded flattened input width

    # Flatten spatial and right-pad by kW-1 so every shifted window slice of
    # length Ho*W stays in bounds (junk columns w >= Wo are cropped afterwards).
    xf = x.reshape(N, C, H * W)
    if kW > 1:
        xf = jnp.pad(xf, ((0, 0), (0, 0), (0, kW - 1)))
    xf = xf.astype(mxu_dtype)

    # weight[o, c, i, j] -> w_r[i*kW + j, o, c]  (taps-major, bf16)
    w_r = jnp.transpose(weight, (2, 3, 0, 1)).reshape(kH * kW, O, C)
    w_r = w_r.astype(mxu_dtype)
    b_r = bias.astype(jnp.float32).reshape(O, 1)

    kernel = functools.partial(
        _edl_conv_kernel, kH=kH, kW=kW, W=W, Ho=Ho, out_tasks=out_tasks)

    out_flat = pl.pallas_call(
        kernel,
        out_shape=jax.ShapeDtypeStruct((N, O, L), jnp.float32),
        grid_spec=pltpu.PrefetchScalarGridSpec(
            num_scalar_prefetch=0,
            grid=(N,),
            in_specs=[
                pl.BlockSpec((1, C, HWp), lambda n: (n, 0, 0)),
                pl.BlockSpec((kH * kW, O, C), lambda n: (0, 0, 0)),
                pl.BlockSpec((O, 1), lambda n: (0, 0)),
            ],
            out_specs=pl.BlockSpec((1, O, L), lambda n: (n, 0, 0)),
        ),
        compiler_params=pltpu.CompilerParams(
            dimension_semantics=("parallel",)),
    )(xf, w_r, b_r)

    # Crop the junk columns (w >= Wo) and split the 4 evidential heads.
    conv = out_flat.reshape(N, O, Ho, W)[:, :, :, :Wo]          # [N, 4T, Ho, Wo]
    stacked = conv.reshape(N, 4, out_tasks, Ho, Wo)
    stacked = jnp.transpose(stacked, (1, 0, 2, 3, 4))           # [4, N, T, Ho, Wo]
    if squeeze_batch:
        stacked = stacked[:, 0]                                 # [4, T, Ho, Wo]
    return stacked


def _reference(x, weight, bias, out_tasks):
    """Pure-JAX f32 reference (same math as the PyTorch module)."""
    conv = jax.lax.conv_general_dilated(
        x.astype(jnp.float32), weight.astype(jnp.float32),
        window_strides=(1, 1), padding="VALID",
        dimension_numbers=("NCHW", "OIHW", "NCHW"))
    conv = conv + bias.astype(jnp.float32)[None, :, None, None]
    T = out_tasks
    gamma = conv[:, 0 * T:1 * T]
    lognu = conv[:, 1 * T:2 * T]
    logalpha = conv[:, 2 * T:3 * T]
    logbeta = conv[:, 3 * T:4 * T]
    sp = jax.nn.softplus
    return jnp.stack([gamma, sp(lognu), sp(logalpha) + 1.0, sp(logbeta)])


if __name__ == "__main__":
    # Small deterministic example: N=2, C=4, H=W=16, out_tasks=3, kernel 3x3.
    key = jax.random.PRNGKey(0)
    kx, kw, kb = jax.random.split(key, 3)

    N, C, H, W = 2, 4, 16, 16
    out_tasks, kH, kW = 3, 3, 3
    O = 4 * out_tasks

    x = jax.random.normal(kx, (N, C, H, W), jnp.float32)

    # PyTorch-style Conv2d default init (uniform in +-1/sqrt(fan_in)).
    fan_in = C * kH * kW
    bound = 1.0 / math.sqrt(fan_in)
    weight = jax.random.uniform(kw, (O, C, kH, kW), jnp.float32, -bound, bound)
    bias = jax.random.uniform(kb, (O,), jnp.float32, -bound, bound)

    fwd = jax.jit(conv2d_normal_gamma, static_argnums=(3,))
    out = jax.block_until_ready(fwd(x, weight, bias, out_tasks))

    ref = _reference(x, weight, bias, out_tasks)
    assert out.shape == (4, N, out_tasks, H - kH + 1, W - kW + 1), out.shape
    # bf16 MXU inputs with f32 accumulation: tolerance loosened vs the pure-f32
    # reference accordingly.
    assert jnp.allclose(out, ref, atol=2e-2, rtol=2e-2), (
        float(jnp.max(jnp.abs(out - ref))))

    print("KERNEL_OK")
</pallas_src>

<mosaic_0001>
module attributes {stable_mosaic.version = 11 : i64} {
  func.func @_edl_conv_kernel(%arg0: i32, %arg1: memref<1x4x258xbf16, #tpu.memory_space<vmem>>, %arg2: memref<9x12x4xbf16, #tpu.memory_space<vmem>>, %arg3: memref<12x1xf32, #tpu.memory_space<vmem>>, %arg4: memref<1x12x224xf32, #tpu.memory_space<vmem>>) attributes {dimension_semantics = [#tpu.dimension_semantics<parallel>], iteration_bounds = array<i64: 2>, scalar_prefetch = 0 : i64, scratch_operands = 0 : i64, tpu.core_type = #tpu.core_type<tc>, window_params = [{transform_indices = @transform_0, window_bounds = array<i64: 1, 4, 258>}, {pipeline_mode = #tpu.pipeline_mode<synchronous>, transform_indices = @transform_1, window_bounds = array<i64: 9, 12, 4>}, {pipeline_mode = #tpu.pipeline_mode<synchronous>, transform_indices = @transform_2, window_bounds = array<i64: 12, 1>}, {transform_indices = @transform_3, window_bounds = array<i64: 1, 12, 224>}]} {
    %c0 = arith.constant 0 : index
    %c0_0 = arith.constant 0 : index
    %c0_1 = arith.constant 0 : index
    %0 = vector.load %arg1[%c0, %c0_0, %c0_1] : memref<1x4x258xbf16, #tpu.memory_space<vmem>>, vector<1x4x224xbf16>
    %1 = vector.shape_cast %0 : vector<1x4x224xbf16> to vector<4x224xbf16>
    %c0_2 = arith.constant 0 : index
    %c0_3 = arith.constant 0 : index
    %c0_4 = arith.constant 0 : index
    %2 = vector.load %arg2[%c0_2, %c0_3, %c0_4] : memref<9x12x4xbf16, #tpu.memory_space<vmem>>, vector<1x12x4xbf16>
    %3 = vector.shape_cast %2 : vector<1x12x4xbf16> to vector<12x4xbf16>
    %cst = arith.constant dense<0.000000e+00> : vector<12x224xf32>
    %4 = tpu.matmul %3, %1, %cst {dimension_numbers = #tpu.dot_dimension_numbers<[1], [0], [0], [1], [0, 0, 1, 1], [], []>} : vector<12x4xbf16>, vector<4x224xbf16>, vector<12x224xf32> -> vector<12x224xf32>
    %c0_5 = arith.constant 0 : index
    %c0_6 = arith.constant 0 : index
    %c1 = arith.constant 1 : index
    %5 = vector.load %arg1[%c0_5, %c0_6, %c1] : memref<1x4x258xbf16, #tpu.memory_space<vmem>>, vector<1x4x224xbf16>
    %6 = vector.shape_cast %5 : vector<1x4x224xbf16> to vector<4x224xbf16>
    %c1_7 = arith.constant 1 : index
    %c0_8 = arith.constant 0 : index
    %c0_9 = arith.constant 0 : index
    %7 = vector.load %arg2[%c1_7, %c0_8, %c0_9] : memref<9x12x4xbf16, #tpu.memory_space<vmem>>, vector<1x12x4xbf16>
    %8 = vector.shape_cast %7 : vector<1x12x4xbf16> to vector<12x4xbf16>
    %cst_10 = arith.constant dense<0.000000e+00> : vector<12x224xf32>
    %9 = tpu.matmul %8, %6, %cst_10 {dimension_numbers = #tpu.dot_dimension_numbers<[1], [0], [0], [1], [0, 0, 1, 1], [], []>} : vector<12x4xbf16>, vector<4x224xbf16>, vector<12x224xf32> -> vector<12x224xf32>
    %10 = arith.addf %4, %9 : vector<12x224xf32>
    %c0_11 = arith.constant 0 : index
    %c0_12 = arith.constant 0 : index
    %c2 = arith.constant 2 : index
    %11 = vector.load %arg1[%c0_11, %c0_12, %c2] : memref<1x4x258xbf16, #tpu.memory_space<vmem>>, vector<1x4x224xbf16>
    %12 = vector.shape_cast %11 : vector<1x4x224xbf16> to vector<4x224xbf16>
    %c2_13 = arith.constant 2 : index
    %c0_14 = arith.constant 0 : index
    %c0_15 = arith.constant 0 : index
    %13 = vector.load %arg2[%c2_13, %c0_14, %c0_15] : memref<9x12x4xbf16, #tpu.memory_space<vmem>>, vector<1x12x4xbf16>
    %14 = vector.shape_cast %13 : vector<1x12x4xbf16> to vector<12x4xbf16>
    %cst_16 = arith.constant dense<0.000000e+00> : vector<12x224xf32>
    %15 = tpu.matmul %14, %12, %cst_16 {dimension_numbers = #tpu.dot_dimension_numbers<[1], [0], [0], [1], [0, 0, 1, 1], [], []>} : vector<12x4xbf16>, vector<4x224xbf16>, vector<12x224xf32> -> vector<12x224xf32>
    %16 = arith.addf %10, %15 : vector<12x224xf32>
    %c0_17 = arith.constant 0 : index
    %c0_18 = arith.constant 0 : index
    %c16 = arith.constant 16 : index
    %17 = vector.load %arg1[%c0_17, %c0_18, %c16] : memref<1x4x258xbf16, #tpu.memory_space<vmem>>, vector<1x4x224xbf16>
    %18 = vector.shape_cast %17 : vector<1x4x224xbf16> to vector<4x224xbf16>
    %c3 = arith.constant 3 : index
    %c0_19 = arith.constant 0 : index
    %c0_20 = arith.constant 0 : index
    %19 = vector.load %arg2[%c3, %c0_19, %c0_20] : memref<9x12x4xbf16, #tpu.memory_space<vmem>>, vector<1x12x4xbf16>
    %20 = vector.shape_cast %19 : vector<1x12x4xbf16> to vector<12x4xbf16>
    %cst_21 = arith.constant dense<0.000000e+00> : vector<12x224xf32>
    %21 = tpu.matmul %20, %18, %cst_21 {dimension_numbers = #tpu.dot_dimension_numbers<[1], [0], [0], [1], [0, 0, 1, 1], [], []>} : vector<12x4xbf16>, vector<4x224xbf16>, vector<12x224xf32> -> vector<12x224xf32>
    %22 = arith.addf %16, %21 : vector<12x224xf32>
    %c0_22 = arith.constant 0 : index
    %c0_23 = arith.constant 0 : index
    %c17 = arith.constant 17 : index
    %23 = vector.load %arg1[%c0_22, %c0_23, %c17] : memref<1x4x258xbf16, #tpu.memory_space<vmem>>, vector<1x4x224xbf16>
    %24 = vector.shape_cast %23 : vector<1x4x224xbf16> to vector<4x224xbf16>
    %c4 = arith.constant 4 : index
    %c0_24 = arith.constant 0 : index
    %c0_25 = arith.constant 0 : index
    %25 = vector.load %arg2[%c4, %c0_24, %c0_25] : memref<9x12x4xbf16, #tpu.memory_space<vmem>>, vector<1x12x4xbf16>
    %26 = vector.shape_cast %25 : vector<1x12x4xbf16> to vector<12x4xbf16>
    %cst_26 = arith.constant dense<0.000000e+00> : vector<12x224xf32>
    %27 = tpu.matmul %26, %24, %cst_26 {dimension_numbers = #tpu.dot_dimension_numbers<[1], [0], [0], [1], [0, 0, 1, 1], [], []>} : vector<12x4xbf16>, vector<4x224xbf16>, vector<12x224xf32> -> vector<12x224xf32>
    %28 = arith.addf %22, %27 : vector<12x224xf32>
    %c0_27 = arith.constant 0 : index
    %c0_28 = arith.constant 0 : index
    %c18 = arith.constant 18 : index
    %29 = vector.load %arg1[%c0_27, %c0_28, %c18] : memref<1x4x258xbf16, #tpu.memory_space<vmem>>, vector<1x4x224xbf16>
    %30 = vector.shape_cast %29 : vector<1x4x224xbf16> to vector<4x224xbf16>
    %c5 = arith.constant 5 : index
    %c0_29 = arith.constant 0 : index
    %c0_30 = arith.constant 0 : index
    %31 = vector.load %arg2[%c5, %c0_29, %c0_30] : memref<9x12x4xbf16, #tpu.memory_space<vmem>>, vector<1x12x4xbf16>
    %32 = vector.shape_cast %31 : vector<1x12x4xbf16> to vector<12x4xbf16>
    %cst_31 = arith.constant dense<0.000000e+00> : vector<12x224xf32>
    %33 = tpu.matmul %32, %30, %cst_31 {dimension_numbers = #tpu.dot_dimension_numbers<[1], [0], [0], [1], [0, 0, 1, 1], [], []>} : vector<12x4xbf16>, vector<4x224xbf16>, vector<12x224xf32> -> vector<12x224xf32>
    %34 = arith.addf %28, %33 : vector<12x224xf32>
    %c0_32 = arith.constant 0 : index
    %c0_33 = arith.constant 0 : index
    %c32 = arith.constant 32 : index
    %35 = vector.load %arg1[%c0_32, %c0_33, %c32] : memref<1x4x258xbf16, #tpu.memory_space<vmem>>, vector<1x4x224xbf16>
    %36 = vector.shape_cast %35 : vector<1x4x224xbf16> to vector<4x224xbf16>
    %c6 = arith.constant 6 : index
    %c0_34 = arith.constant 0 : index
    %c0_35 = arith.constant 0 : index
    %37 = vector.load %arg2[%c6, %c0_34, %c0_35] : memref<9x12x4xbf16, #tpu.memory_space<vmem>>, vector<1x12x4xbf16>
    %38 = vector.shape_cast %37 : vector<1x12x4xbf16> to vector<12x4xbf16>
    %cst_36 = arith.constant dense<0.000000e+00> : vector<12x224xf32>
    %39 = tpu.matmul %38, %36, %cst_36 {dimension_numbers = #tpu.dot_dimension_numbers<[1], [0], [0], [1], [0, 0, 1, 1], [], []>} : vector<12x4xbf16>, vector<4x224xbf16>, vector<12x224xf32> -> vector<12x224xf32>
    %40 = arith.addf %34, %39 : vector<12x224xf32>
    %c0_37 = arith.constant 0 : index
    %c0_38 = arith.constant 0 : index
    %c33 = arith.constant 33 : index
    %41 = vector.load %arg1[%c0_37, %c0_38, %c33] : memref<1x4x258xbf16, #tpu.memory_space<vmem>>, vector<1x4x224xbf16>
    %42 = vector.shape_cast %41 : vector<1x4x224xbf16> to vector<4x224xbf16>
    %c7 = arith.constant 7 : index
    %c0_39 = arith.constant 0 : index
    %c0_40 = arith.constant 0 : index
    %43 = vector.load %arg2[%c7, %c0_39, %c0_40] : memref<9x12x4xbf16, #tpu.memory_space<vmem>>, vector<1x12x4xbf16>
    %44 = vector.shape_cast %43 : vector<1x12x4xbf16> to vector<12x4xbf16>
    %cst_41 = arith.constant dense<0.000000e+00> : vector<12x224xf32>
    %45 = tpu.matmul %44, %42, %cst_41 {dimension_numbers = #tpu.dot_dimension_numbers<[1], [0], [0], [1], [0, 0, 1, 1], [], []>} : vector<12x4xbf16>, vector<4x224xbf16>, vector<12x224xf32> -> vector<12x224xf32>
    %46 = arith.addf %40, %45 : vector<12x224xf32>
    %c0_42 = arith.constant 0 : index
    %c0_43 = arith.constant 0 : index
    %c34 = arith.constant 34 : index
    %47 = vector.load %arg1[%c0_42, %c0_43, %c34] : memref<1x4x258xbf16, #tpu.memory_space<vmem>>, vector<1x4x224xbf16>
    %48 = vector.shape_cast %47 : vector<1x4x224xbf16> to vector<4x224xbf16>
    %c8 = arith.constant 8 : index
    %c0_44 = arith.constant 0 : index
    %c0_45 = arith.constant 0 : index
    %49 = vector.load %arg2[%c8, %c0_44, %c0_45] : memref<9x12x4xbf16, #tpu.memory_space<vmem>>, vector<1x12x4xbf16>
    %50 = vector.shape_cast %49 : vector<1x12x4xbf16> to vector<12x4xbf16>
    %cst_46 = arith.constant dense<0.000000e+00> : vector<12x224xf32>
    %51 = tpu.matmul %50, %48, %cst_46 {dimension_numbers = #tpu.dot_dimension_numbers<[1], [0], [0], [1], [0, 0, 1, 1], [], []>} : vector<12x4xbf16>, vector<4x224xbf16>, vector<12x224xf32> -> vector<12x224xf32>
    %52 = arith.addf %46, %51 : vector<12x224xf32>
    %c0_47 = arith.constant 0 : index
    %c0_48 = arith.constant 0 : index
    %53 = vector.load %arg3[%c0_47, %c0_48] : memref<12x1xf32, #tpu.memory_space<vmem>>, vector<12x1xf32>
    %54 = vector.broadcast %53 : vector<12x1xf32> to vector<12x224xf32>
    %55 = arith.addf %52, %54 : vector<12x224xf32>
    %56 = tpu.iota {dimensions = array<i32: 0>} : vector<12x224xi32>
    %c3_i32 = arith.constant 3 : i32
    %57 = vector.broadcast %c3_i32 : i32 to vector<12x224xi32>
    %58 = arith.cmpi slt, %56, %57 : vector<12x224xi32>
    %c6_i32 = arith.constant 6 : i32
    %59 = vector.broadcast %c6_i32 : i32 to vector<12x224xi32>
    %60 = arith.cmpi sge, %56, %59 : vector<12x224xi32>
    %c9_i32 = arith.constant 9 : i32
    %61 = vector.broadcast %c9_i32 : i32 to vector<12x224xi32>
    %62 = arith.cmpi slt, %56, %61 : vector<12x224xi32>
    %63 = arith.andi %60, %62 : vector<12x224xi1>
    %cst_49 = arith.constant 0.000000e+00 : f32
    %64 = vector.broadcast %cst_49 : f32 to vector<12x224xf32>
    %65 = arith.maximumf %55, %64 : vector<12x224xf32>
    %66 = math.absf %55 : vector<12x224xf32>
    %cst_50 = arith.constant 0.000000e+00 : f32
    %67 = vector.broadcast %cst_50 : f32 to vector<12x224xf32>
    %68 = arith.subf %67, %66 : vector<12x224xf32>
    %69 = math.exp %68 : vector<12x224xf32>
    %70 = math.log1p %69 : vector<12x224xf32>
    %71 = arith.addf %65, %70 : vector<12x224xf32>
    %72 = arith.extui %63 : vector<12x224xi1> to vector<12x224xi32>
    %73 = arith.sitofp %72 : vector<12x224xi32> to vector<12x224xf32>
    %74 = arith.addf %71, %73 : vector<12x224xf32>
    %75 = arith.select %58, %55, %74 : vector<12x224xi1>, vector<12x224xf32>
    %c0_51 = arith.constant 0 : index
    %c0_52 = arith.constant 0 : index
    %c0_53 = arith.constant 0 : index
    %76 = vector.load %arg4[%c0_51, %c0_52, %c0_53] : memref<1x12x224xf32, #tpu.memory_space<vmem>>, vector<1x12x224xf32>
    %77 = vector.shape_cast %76 : vector<1x12x224xf32> to vector<12x224xf32>
    %78 = vector.shape_cast %75 : vector<12x224xf32> to vector<1x12x224xf32>
    tpu.vector_store %arg4[%c0_51, %c0_52, %c0_53], %78 {strides = array<i32>} : memref<1x12x224xf32, #tpu.memory_space<vmem>>, vector<1x12x224xf32>,
    return
  }
  func.func @transform_0(%arg0: i32) -> (i32, i32, i32) {
    %c0_i32 = arith.constant 0 : i32
    %c0_i32_0 = arith.constant 0 : i32
    %c0_i32_1 = arith.constant 0 : i32
    return %arg0, %c0_i32, %c0_i32_0 : i32, i32, i32
  }
  func.func @transform_1(%arg0: i32) -> (i32, i32, i32) {
    %c0_i32 = arith.constant 0 : i32
    %c0_i32_0 = arith.constant 0 : i32
    %c0_i32_1 = arith.constant 0 : i32
    %c0_i32_2 = arith.constant 0 : i32
    return %c0_i32, %c0_i32_0, %c0_i32_1 : i32, i32, i32
  }
  func.func @transform_2(%arg0: i32) -> (i32, i32) {
    %c0_i32 = arith.constant 0 : i32
    %c0_i32_0 = arith.constant 0 : i32
    %c0_i32_1 = arith.constant 0 : i32
    return %c0_i32, %c0_i32_0 : i32, i32
  }
  func.func @transform_3(%arg0: i32) -> (i32, i32, i32) {
    %c0_i32 = arith.constant 0 : i32
    %c0_i32_0 = arith.constant 0 : i32
    %c0_i32_1 = arith.constant 0 : i32
    return %arg0, %c0_i32, %c0_i32_0 : i32, i32, i32
  }
}

</mosaic_0001>

<llo_original>
// kernel: conv2d_normal_gamma.1
$region0: #{conv2d_normal_gamma.1}
  #allocation0 [shape = 'u32[]', space=smem, size = 0x4, offset = 0x4, fixed_abs, tag = 'smem constant byte address 0x4 - core index']
  #allocation1 [shape = 'u32[144,128]{1,0:T(1,128)}', space=vmem, size = 0x12000, scoped, tag = 'internal scratch']
  %s0 = inlined_call_operand.vmem [shape: bf16[2,4,258], index: 0, kind: input, shape index: {}]
  %s1 = inlined_call_operand.vmem [shape: bf16[9,12,4], index: 1, kind: input, shape index: {}]
  %s2 = inlined_call_operand.vmem [shape: f32[12,1], index: 2, kind: input, shape index: {}]
  %s3 = inlined_call_operand.vmem [shape: f32[2,12,224], index: 3, kind: output, shape index: {}]
  %s4 = sld [smem:[#allocation0]]
  $region45: #{conv2d_normal_gamma.1} parent=0
    _
  %s6 = ssub.s32 1, %s4
  %s7 = scalar_select 0, %s6, %s4
  loop: start=0, step=1, limit=4
  $region2: #{conv2d_normal_gamma.1} parent=0 // loop_pre_header
    _
  $region3: #{conv2d_normal_gamma.1} parent=0 // loop_header
    %s9 = sphi 0, %s13
    %p10 = scmp.ge.s32.totalorder %s9, 4
    %s19 = sphi 0, %s21
    %s22 = sphi 0, %s19
    %s23 = sphi 0, %s22
    %s39 = sphi 0, %s23
    %s43 = sphi 0, %s43
    %s45 = sphi 0, %s43
    %s46 = sphi 0, %s45
    %s60 = sphi 0, %s46
    %s64 = sphi 0, %s64
    %s66 = sphi 0, %s64
    %s67 = sphi 0, %s66
    %s81 = sphi 0, %s67
    %s87 = sphi 0, %s89
    %s90 = sphi 0, %s87
    %s91 = sphi 0, %s90
    %s107 = sphi 0, %s91
  $region4: #{conv2d_normal_gamma.1} parent=0 // loop_header_branch
    %12 = sbr.rel (%p10) target = $region8
  $region5: #{conv2d_normal_gamma.1} parent=0 // loop_body
    %s14 = ssub.s32 %s9, 1
    %s15 = ssub.s32 %s9, 2
    %s16 = sadd.s32 %s9, 1
    %s17 = ssub.s32 %s9, %s16
    %p18 = scmp.eq.s32.totalorder %s17, 0
    %s20 = sadd.s32 %s19, 1
    %s21 = scalar_select %p18, %s19, %s20
    %p24 = pneg %p18
    %p25 = scmp.eq.s32.totalorder %s9, 1
    %p26 = por %p24, %p25
    %p27 = scmp.ne.s32.totalorder %s19, %s22
    %p28 = scmp.eq.s32.totalorder %s9, 0
    %p29 = por %p27, %p28
    %p30 = scmp.ne.s32.totalorder %s19, %s22
    %p31 = scmp.eq.s32.totalorder %s14, 1
    %p32 = por %p30, %p31
    %p33 = scmp.ne.s32.totalorder %s22, %s23
    %p34 = scmp.eq.s32.totalorder %s14, 0
    %p35 = por %p33, %p34
    %p36 = scmp.ne.s32.totalorder %s22, %s23
    %p37 = scmp.eq.s32.totalorder %s15, 1
    %p38 = por %p36, %p37
    %p40 = scmp.ne.s32.totalorder %s23, %s39
    %p41 = scmp.eq.s32.totalorder %s15, 0
    %p42 = por %p40, %p41
    %s44 = sadd.s32 %s43, 1
    %p47 = scmp.eq.s32.totalorder %s9, 1
    %p48 = scmp.ne.s32.totalorder %s43, %s45
    %p49 = scmp.eq.s32.totalorder %s9, 0
    %p50 = por %p48, %p49
    %p51 = scmp.ne.s32.totalorder %s43, %s45
    %p52 = scmp.eq.s32.totalorder %s14, 1
    %p53 = por %p51, %p52
    %p54 = scmp.ne.s32.totalorder %s45, %s46
    %p55 = scmp.eq.s32.totalorder %s14, 0
    %p56 = por %p54, %p55
    %p57 = scmp.ne.s32.totalorder %s45, %s46
    %p58 = scmp.eq.s32.totalorder %s15, 1
    %p59 = por %p57, %p58
    %p61 = scmp.ne.s32.totalorder %s46, %s60
    %p62 = scmp.eq.s32.totalorder %s15, 0
    %p63 = por %p61, %p62
    %s65 = sadd.s32 %s64, 1
    %p68 = scmp.eq.s32.totalorder %s9, 1
    %p69 = scmp.ne.s32.totalorder %s64, %s66
    %p70 = scmp.eq.s32.totalorder %s9, 0
    %p71 = por %p69, %p70
    %p72 = scmp.ne.s32.totalorder %s64, %s66
    %p73 = scmp.eq.s32.totalorder %s14, 1
    %p74 = por %p72, %p73
    %p75 = scmp.ne.s32.totalorder %s66, %s67
    %p76 = scmp.eq.s32.totalorder %s14, 0
    %p77 = por %p75, %p76
    %p78 = scmp.ne.s32.totalorder %s66, %s67
    %p79 = scmp.eq.s32.totalorder %s15, 1
    %p80 = por %p78, %p79
    %p82 = scmp.ne.s32.totalorder %s67, %s81
    %p83 = scmp.eq.s32.totalorder %s15, 0
    %p84 = por %p82, %p83
    %s85 = ssub.s32 %s9, %s16
    %p86 = scmp.eq.s32.totalorder %s85, 0
    %s88 = sadd.s32 %s87, 1
    %s89 = scalar_select %p86, %s87, %s88
    %p92 = pneg %p86
    %p93 = scmp.eq.s32.totalorder %s9, 1
    %p94 = por %p92, %p93
    %p95 = scmp.ne.s32.totalorder %s87, %s90
    %p96 = scmp.eq.s32.totalorder %s9, 0
    %p97 = por %p95, %p96
    %p98 = scmp.ne.s32.totalorder %s87, %s90
    %p99 = scmp.eq.s32.totalorder %s14, 1
    %p100 = por %p98, %p99
    %p101 = scmp.ne.s32.totalorder %s90, %s91
    %p102 = scmp.eq.s32.totalorder %s14, 0
    %p103 = por %p101, %p102
    %p104 = scmp.ne.s32.totalorder %s90, %s91
    %p105 = scmp.eq.s32.totalorder %s15, 1
    %p106 = por %p104, %p105
    %p108 = scmp.ne.s32.totalorder %s91, %s107
    %p109 = scmp.eq.s32.totalorder %s15, 0
    %p110 = por %p108, %p109
    %p111 = scmp.le.s32.totalorder 1, %s9
    %p112 = scmp.lt.s32.totalorder %s9, 3
    %p113 = pnand %p111, %p112
    %p114 = pneg %p113
    // Predicated region
    $region9: #{conv2d_normal_gamma.1} parent=5 // pred_check
      _
    $region10: #{conv2d_normal_gamma.1} parent=5 // pred_check_branch
      %116 = sbr.rel (%p113) target = $region12
    $region11: #{conv2d_normal_gamma.1} parent=5 // pred_region
      %s117 = ssub.s32 %s9, 1
      // Predicated region
      $region13: #{conv2d_normal_gamma.1} parent=11 // pred_check
        %p118 = pneg %p56
      $region14: #{conv2d_normal_gamma.1} parent=11 // pred_check_branch
        %120 = sbr.rel (%p118) target = $region16
      $region15: #{conv2d_normal_gamma.1} parent=11 // pred_region
        _
      $region16: #{conv2d_normal_gamma.1} parent=11 // pred_fallthru
        _
      // Predicated region
      $region17: #{conv2d_normal_gamma.1} parent=11 // pred_check
        %p121 = pneg %p77
      $region18: #{conv2d_normal_gamma.1} parent=11 // pred_check_branch
        %123 = sbr.rel (%p121) target = $region20
      $region19: #{conv2d_normal_gamma.1} parent=11 // pred_region
        _
      $region20: #{conv2d_normal_gamma.1} parent=11 // pred_fallthru
        _
    $region12: #{conv2d_normal_gamma.1} parent=5 // pred_fallthru
      _
    %p124 = scmp.lt.s32.totalorder %s9, 2
    // Predicated region
    $region21: #{conv2d_normal_gamma.1} parent=5 // pred_check
      %p125 = pneg %p124
    $region22: #{conv2d_normal_gamma.1} parent=5 // pred_check_branch
      %127 = sbr.rel (%p125) target = $region24
    $region23: #{conv2d_normal_gamma.1} parent=5 // pred_region
      // Predicated region
      $region25: #{conv2d_normal_gamma.1} parent=23 // pred_check
        %p128 = pneg %p29
      $region26: #{conv2d_normal_gamma.1} parent=23 // pred_check_branch
        %130 = sbr.rel (%p128) target = $region28
      $region27: #{conv2d_normal_gamma.1} parent=23 // pred_region
        %p131 = scmp.lt.s32.totalorder %s9, 1
        %s132 = scalar_select %p131, %s9, 1
        %s133 = smul.addr %s132, 3
        %s134 = smul.addr %s133, 2
        %s135 = scalar_lea.vmem %s0, %s134
      $region28: #{conv2d_normal_gamma.1} parent=23 // pred_fallthru
        _
    $region24: #{conv2d_normal_gamma.1} parent=5 // pred_fallthru
      _
    %p136 = scmp.le.s32.totalorder 1, %s9
    %p137 = scmp.lt.s32.totalorder %s9, 3
    %p138 = pnand %p136, %p137
    %p139 = pneg %p138
    // Predicated region
    $region29: #{conv2d_normal_gamma.1} parent=5 // pred_check
      _
    $region30: #{conv2d_normal_gamma.1} parent=5 // pred_check_branch
      %141 = sbr.rel (%p138) target = $region32
    $region31: #{conv2d_normal_gamma.1} parent=5 // pred_region
      %s142 = ssub.s32 %s9, 1
      %p143 = scmp.lt.s32.totalorder %s14, 1
      %s144 = scalar_select %p143, %s14, 1
      %s145 = smul.addr %s144, 3
      %s146 = smul.addr %s145, 2
      %s147 = scalar_lea.vmem %s0, %s146
      %p148 = pneg %p35
      %p149 = pneg %p32
      %p150 = pneg %p56
      %p151 = pneg %p53
      %p152 = pneg %p77
      %p153 = pneg %p74
      %p154 = pneg %p103
      %p155 = pneg %p100
      %p156 = scmp.lt.s32.totalorder %s14, 1
      %s157 = scalar_select %p156, %s14, 1
      %s158 = smul.addr %s157, 4
      %s159 = smul.addr %s158, 8
      %s160 = scalar_lea.vmem %s3, %s159
      %p161 = scmp.lt.s32.totalorder %s14, 1
      %s162 = scalar_select %p161, %s14, 1
      %s163 = smul.addr %s162, 3
      %s164 = smul.addr %s163, 2
      %s165 = scalar_lea.vmem %s0, %s164
      %p166 = scmp.lt.s32.totalorder %s14, 1
      %s167 = scalar_select %p166, %s14, 1
      %s168 = smul.addr %s167, 4
      %s169 = smul.addr %s168, 8
      %s170 = scalar_lea.vmem %s3, %s169
      %v172 = vld [vmem:[%s165] sm:$0xf]
      %v173 = vld [vmem:[%s1] sm:$0xf]
      %v174 = vld [vmem:[%s1 + $0x4] sm:$0x3]
      %s175 = scalar_lea.vmem %s1, 8
      %v176 = vld [vmem:[%s175] sm:$0xf]
      %v177 = vld [vmem:[%s175 + $0x4] sm:$0x3]
      %v180 = vunpack.c.l.b16 %v176
      %v181 = vunpack.c.l.b16 %v177
      %v182 = vpack.c.b16 %v181, %v180
      %v185 = vunpack.c.l.s4 1983009808
      %v186 = vunpack.c.0.s8 %v185
      %v187 = vlaneseq
      %v188 = vshrl.u32 %v187, 7
      %v189 = vsub.s32 %v186, %v188
      %v190 = vrot.slane %v172, %v189
      %v191 = vcombine.high %v190, %v190
      %192 = vrot.lane.b32.xlu0 %v190, 127
      %v193 = vpop.permute.xlu0 %192
      %194 = vrot.lane.b32.xlu0 %v191, 127
      %v195 = vpop.permute.xlu0 %194
      %vm196 = vcmask 1039360
      %v197 = vsel %vm196, %v193, %v195
      %vm198 = vcmask 31744
      %v200 = vsel %vm198, %v182, 0
      %vm202 = vcmask 1041408
      %v204 = vsel %vm202, %v197, 0
      %v207 = vsel %vm202, %v195, 0
      %209 = vmatprep.subr.bf16.mxu0 0
      %210 = vmatpush1.bf16.msra.mxu0 0
      %211 = vmatprep.subr.bf16.mxu0 0
      %212 = vmatpush1.bf16.msra.mxu0 0
      %213 = vmatprep.subr.bf16.mxu0 0
      %214 = vmatpush1.bf16.msra.mxu0 0
      %215 = vmatprep.subr.bf16.mxu0 0
      %216 = vmatpush1.bf16.msra.mxu0 0
      %217 = vmatprep.subr.bf16.mxu0 0
      %218 = vmatpush1.bf16.msra.mxu0 0
      %219 = vmatprep.subr.bf16.mxu0 0
      %220 = vmatpush1.bf16.msra.mxu0 0
      %221 = vmatprep.subr.bf16.mxu0 0
      %222 = vmatpush1.bf16.msra.mxu0 0
      %223 = vmatprep.subr.bf16.mxu0 %v207
      %224 = vmatpush1.bf16.msra.mxu0 %v204
      %225 = vmatprep.subr.bf16.mxu0 0
      %226 = vmatpush2.bf16.msra.mxu0 0
      %227 = vmatprep.subr.bf16.mxu0 0
      %228 = vmatpush2.bf16.msra.mxu0 0
      %229 = vmatprep.subr.bf16.mxu0 0
      %230 = vmatpush2.bf16.msra.mxu0 0
      %231 = vmatprep.subr.bf16.mxu0 0
      %232 = vmatpush2.bf16.msra.mxu0 0
      %233 = vmatprep.subr.bf16.mxu0 0
      %234 = vmatpush2.bf16.msra.mxu0 0
      %235 = vmatprep.subr.bf16.mxu0 0
      %236 = vmatpush2.bf16.msra.mxu0 0
      %237 = vmatprep.subr.bf16.mxu0 0
      %238 = vmatpush2.bf16.msra.mxu0 0
      %239 = vmatprep.subr.bf16.mxu0 0
      %240 = vmatpush2.bf16.msra.mxu0 0
      %241 = vmatprep.mubr.bf16.mxu0 0
      %242 = vmatmul.mubr.bf16.gmra.mxu0 %v200
      %v243 = vpop.f32.mrf.mxu0
      %v244 = vadd.f32 0.0, %v243
      %v245 = vpop.f32.mrf.mxu0
      %v246 = vadd.f32 0.0, %v245
      %v247 = vpop.f32.mrf.mxu0
      %v248 = vadd.f32 0.0, %v247
      %v249 = vpop.f32.mrf.mxu0
      %v250 = vadd.f32 0.0, %v249
      %251 = vdwg.mxu0
      %v254 = vunpack.c.l.b16 %v173
      %v255 = vunpack.c.l.b16 %v174
      %v256 = vpack.c.b16 %v255, %v254
      %v258 = vsel %vm198, %v256, 0
      %v261 = vsel %vm202, %v190, 0
      %v264 = vsel %vm202, %v191, 0
      %266 = vmatprep.subr.bf16.mxu0 0
      %267 = vmatpush1.bf16.msra.mxu0 0
      %268 = vmatprep.subr.bf16.mxu0 0
      %269 = vmatpush1.bf16.msra.mxu0 0
      %270 = vmatprep.subr.bf16.mxu0 0
      %271 = vmatpush1.bf16.msra.mxu0 0
      %272 = vmatprep.subr.bf16.mxu0 0
      %273 = vmatpush1.bf16.msra.mxu0 0
      %274 = vmatprep.subr.bf16.mxu0 0
      %275 = vmatpush1.bf16.msra.mxu0 0
      %276 = vmatprep.subr.bf16.mxu0 0
      %277 = vmatpush1.bf16.msra.mxu0 0
      %278 = vmatprep.subr.bf16.mxu0 0
      %279 = vmatpush1.bf16.msra.mxu0 0
      %280 = vmatprep.subr.bf16.mxu0 %v264
      %281 = vmatpush1.bf16.msra.mxu0 %v261
      %282 = vmatprep.subr.bf16.mxu0 0
      %283 = vmatpush2.bf16.msra.mxu0 0
      %284 = vmatprep.subr.bf16.mxu0 0
      %285 = vmatpush2.bf16.msra.mxu0 0
      %286 = vmatprep.subr.bf16.mxu0 0
      %287 = vmatpush2.bf16.msra.mxu0 0
      %288 = vmatprep.subr.bf16.mxu0 0
      %289 = vmatpush2.bf16.msra.mxu0 0
      %290 = vmatprep.subr.bf16.mxu0 0
      %291 = vmatpush2.bf16.msra.mxu0 0
      %292 = vmatprep.subr.bf16.mxu0 0
      %293 = vmatpush2.bf16.msra.mxu0 0
      %294 = vmatprep.subr.bf16.mxu0 0
      %295 = vmatpush2.bf16.msra.mxu0 0
      %296 = vmatprep.subr.bf16.mxu0 0
      %297 = vmatpush2.bf16.msra.mxu0 0
      %298 = vmatprep.mubr.bf16.mxu0 0
      %299 = vmatmul.mubr.bf16.gmra.mxu0 %v258
      %v300 = vpop.f32.mrf.mxu0
      %v301 = vadd.f32 %v244, %v300
      %v302 = vpop.f32.mrf.mxu0
      %v303 = vadd.f32 %v246, %v302
      %v304 = vpop.f32.mrf.mxu0
      %v305 = vadd.f32 %v248, %v304
      %v306 = vpop.f32.mrf.mxu0
      %v307 = vadd.f32 %v250, %v306
      %308 = vdwg.mxu0
      %v309 = vld [vmem:[%s165] sm:$0xf]
      %s310 = scalar_lea.vmem %s1, 16
      %v311 = vld [vmem:[%s310] sm:$0xf]
      %v312 = vld [vmem:[%s310 + $0x4] sm:$0x3]
      %v315 = vunpack.c.l.b16 %v311
      %v316 = vunpack.c.l.b16 %v312
      %v317 = vpack.c.b16 %v316, %v315
      %v320 = vunpack.c.l.s4 1983009808
      %v321 = vunpack.c.0.s8 %v320
      %v322 = vlaneseq
      %v323 = vshrl.u32 %v322, 7
      %v324 = vsub.s32 %v321, %v323
      %v325 = vrot.slane %v309, %v324
      %v326 = vcombine.high %v325, %v325
      %327 = vrot.lane.b32.xlu0 %v325, 126
      %v328 = vpop.permute.xlu0 %327
      %329 = vrot.lane.b32.xlu0 %v326, 126
      %v330 = vpop.permute.xlu0 %329
      %vm331 = vcmask 1031168
      %v332 = vsel %vm331, %v328, %v330
      %v334 = vsel %vm198, %v317, 0
      %v337 = vsel %vm202, %v332, 0
      %v340 = vsel %vm202, %v330, 0
      %342 = vmatprep.subr.bf16.mxu0 0
      %343 = vmatpush1.bf16.msra.mxu0 0
      %344 = vmatprep.subr.bf16.mxu0 0
      %345 = vmatpush1.bf16.msra.mxu0 0
      %346 = vmatprep.subr.bf16.mxu0 0
      %347 = vmatpush1.bf16.msra.mxu0 0
      %348 = vmatprep.subr.bf16.mxu0 0
      %349 = vmatpush1.bf16.msra.mxu0 0
      %350 = vmatprep.subr.bf16.mxu0 0
      %351 = vmatpush1.bf16.msra.mxu0 0
      %352 = vmatprep.subr.bf16.mxu0 0
      %353 = vmatpush1.bf16.msra.mxu0 0
      %354 = vmatprep.subr.bf16.mxu0 0
      %355 = vmatpush1.bf16.msra.mxu0 0
      %356 = vmatprep.subr.bf16.mxu0 %v340
      %357 = vmatpush1.bf16.msra.mxu0 %v337
      %358 = vmatprep.subr.bf16.mxu0 0
      %359 = vmatpush2.bf16.msra.mxu0 0
      %360 = vmatprep.subr.bf16.mxu0 0
      %361 = vmatpush2.bf16.msra.mxu0 0
      %362 = vmatprep.subr.bf16.mxu0 0
      %363 = vmatpush2.bf16.msra.mxu0 0
      %364 = vmatprep.subr.bf16.mxu0 0
      %365 = vmatpush2.bf16.msra.mxu0 0
      %366 = vmatprep.subr.bf16.mxu0 0
      %367 = vmatpush2.bf16.msra.mxu0 0
      %368 = vmatprep.subr.bf16.mxu0 0
      %369 = vmatpush2.bf16.msra.mxu0 0
      %370 = vmatprep.subr.bf16.mxu0 0
      %371 = vmatpush2.bf16.msra.mxu0 0
      %372 = vmatprep.subr.bf16.mxu0 0
      %373 = vmatpush2.bf16.msra.mxu0 0
      %374 = vmatprep.mubr.bf16.mxu0 0
      %375 = vmatmul.mubr.bf16.gmra.mxu0 %v334
      %v376 = vpop.f32.mrf.mxu0
      %v377 = vadd.f32 0.0, %v376
      %v378 = vpop.f32.mrf.mxu0
      %v379 = vadd.f32 0.0, %v378
      %v380 = vpop.f32.mrf.mxu0
      %v381 = vadd.f32 0.0, %v380
      %v382 = vpop.f32.mrf.mxu0
      %v383 = vadd.f32 0.0, %v382
      %384 = vdwg.mxu0
      %v385 = vadd.f32 %v301, %v377
      %v386 = vadd.f32 %v303, %v379
      %v387 = vadd.f32 %v305, %v381
      %v388 = vadd.f32 %v307, %v383
      %v389 = vld [vmem:[%s165] sm:$0xf]
      %s390 = scalar_lea.vmem %s1, 24
      %v391 = vld [vmem:[%s390] sm:$0xf]
      %v392 = vld [vmem:[%s390 + $0x4] sm:$0x3]
      %v395 = vunpack.c.l.b16 %v391
      %v396 = vunpack.c.l.b16 %v392
      %v397 = vpack.c.b16 %v396, %v395
      %v400 = vunpack.c.l.s4 1983009808
      %v401 = vunpack.c.0.s8 %v400
      %v402 = vlaneseq
      %v403 = vshrl.u32 %v402, 7
      %v404 = vsub.s32 %v401, %v403
      %v405 = vrot.slane %v389, %v404
      %v406 = vcombine.high %v405, %v405
      %407 = vrot.lane.b32.xlu0 %v405, 112
      %v408 = vpop.permute.xlu0 %407
      %409 = vrot.lane.b32.xlu0 %v406, 112
      %v410 = vpop.permute.xlu0 %409
      %vm411 = vcmask 916480
      %v412 = vsel %vm411, %v408, %v410
      %v414 = vsel %vm198, %v397, 0
      %v417 = vsel %vm202, %v412, 0
      %v420 = vsel %vm202, %v410, 0
      %422 = vmatprep.subr.bf16.mxu0 0
      %423 = vmatpush1.bf16.msra.mxu0 0
      %424 = vmatprep.subr.bf16.mxu0 0
      %425 = vmatpush1.bf16.msra.mxu0 0
      %426 = vmatprep.subr.bf16.mxu0 0
      %427 = vmatpush1.bf16.msra.mxu0 0
      %428 = vmatprep.subr.bf16.mxu0 0
      %429 = vmatpush1.bf16.msra.mxu0 0
      %430 = vmatprep.subr.bf16.mxu0 0
      %431 = vmatpush1.bf16.msra.mxu0 0
      %432 = vmatprep.subr.bf16.mxu0 0
      %433 = vmatpush1.bf16.msra.mxu0 0
      %434 = vmatprep.subr.bf16.mxu0 0
      %435 = vmatpush1.bf16.msra.mxu0 0
      %436 = vmatprep.subr.bf16.mxu0 %v420
      %437 = vmatpush1.bf16.msra.mxu0 %v417
      %438 = vmatprep.subr.bf16.mxu0 0
      %439 = vmatpush2.bf16.msra.mxu0 0
      %440 = vmatprep.subr.bf16.mxu0 0
      %441 = vmatpush2.bf16.msra.mxu0 0
      %442 = vmatprep.subr.bf16.mxu0 0
      %443 = vmatpush2.bf16.msra.mxu0 0
      %444 = vmatprep.subr.bf16.mxu0 0
      %445 = vmatpush2.bf16.msra.mxu0 0
      %446 = vmatprep.subr.bf16.mxu0 0
      %447 = vmatpush2.bf16.msra.mxu0 0
      %448 = vmatprep.subr.bf16.mxu0 0
      %449 = vmatpush2.bf16.msra.mxu0 0
      %450 = vmatprep.subr.bf16.mxu0 0
      %451 = vmatpush2.bf16.msra.mxu0 0
      %452 = vmatprep.subr.bf16.mxu0 0
      %453 = vmatpush2.bf16.msra.mxu0 0
      %454 = vmatprep.mubr.bf16.mxu0 0
      %455 = vmatmul.mubr.bf16.gmra.mxu0 %v414
      %v456 = vpop.f32.mrf.mxu0
      %v457 = vadd.f32 0.0, %v456
      %v458 = vpop.f32.mrf.mxu0
      %v459 = vadd.f32 0.0, %v458
      %v460 = vpop.f32.mrf.mxu0
      %v461 = vadd.f32 0.0, %v460
      %v462 = vpop.f32.mrf.mxu0
      %v463 = vadd.f32 0.0, %v462
      %464 = vdwg.mxu0
      %v465 = vadd.f32 %v385, %v457
      %v466 = vadd.f32 %v386, %v459
      %v467 = vadd.f32 %v387, %v461
      %v468 = vadd.f32 %v388, %v463
      %v469 = vld [vmem:[%s165] sm:$0xf]
      %s470 = scalar_lea.vmem %s1, 32
      %v471 = vld [vmem:[%s470] sm:$0xf]
      %v472 = vld [vmem:[%s470 + $0x4] sm:$0x3]
      %v475 = vunpack.c.l.b16 %v471
      %v476 = vunpack.c.l.b16 %v472
      %v477 = vpack.c.b16 %v476, %v475
      %v480 = vunpack.c.l.s4 1983009808
      %v481 = vunpack.c.0.s8 %v480
      %v482 = vlaneseq
      %v483 = vshrl.u32 %v482, 7
      %v484 = vsub.s32 %v481, %v483
      %v485 = vrot.slane %v469, %v484
      %v486 = vcombine.high %v485, %v485
      %487 = vrot.lane.b32.xlu0 %v485, 111
      %v488 = vpop.permute.xlu0 %487
      %489 = vrot.lane.b32.xlu0 %v486, 111
      %v490 = vpop.permute.xlu0 %489
      %vm491 = vcmask 908288
      %v492 = vsel %vm491, %v488, %v490
      %v494 = vsel %vm198, %v477, 0
      %v497 = vsel %vm202, %v492, 0
      %v500 = vsel %vm202, %v490, 0
      %502 = vmatprep.subr.bf16.mxu0 0
      %503 = vmatpush1.bf16.msra.mxu0 0
      %504 = vmatprep.subr.bf16.mxu0 0
      %505 = vmatpush1.bf16.msra.mxu0 0
      %506 = vmatprep.subr.bf16.mxu0 0
      %507 = vmatpush1.bf16.msra.mxu0 0
      %508 = vmatprep.subr.bf16.mxu0 0
      %509 = vmatpush1.bf16.msra.mxu0 0
      %510 = vmatprep.subr.bf16.mxu0 0
      %511 = vmatpush1.bf16.msra.mxu0 0
      %512 = vmatprep.subr.bf16.mxu0 0
      %513 = vmatpush1.bf16.msra.mxu0 0
      %514 = vmatprep.subr.bf16.mxu0 0
      %515 = vmatpush1.bf16.msra.mxu0 0
      %516 = vmatprep.subr.bf16.mxu0 %v500
      %517 = vmatpush1.bf16.msra.mxu0 %v497
      %518 = vmatprep.subr.bf16.mxu0 0
      %519 = vmatpush2.bf16.msra.mxu0 0
      %520 = vmatprep.subr.bf16.mxu0 0
      %521 = vmatpush2.bf16.msra.mxu0 0
      %522 = vmatprep.subr.bf16.mxu0 0
      %523 = vmatpush2.bf16.msra.mxu0 0
      %524 = vmatprep.subr.bf16.mxu0 0
      %525 = vmatpush2.bf16.msra.mxu0 0
      %526 = vmatprep.subr.bf16.mxu0 0
      %527 = vmatpush2.bf16.msra.mxu0 0
      %528 = vmatprep.subr.bf16.mxu0 0
      %529 = vmatpush2.bf16.msra.mxu0 0
      %530 = vmatprep.subr.bf16.mxu0 0
      %531 = vmatpush2.bf16.msra.mxu0 0
      %532 = vmatprep.subr.bf16.mxu0 0
      %533 = vmatpush2.bf16.msra.mxu0 0
      %534 = vmatprep.mubr.bf16.mxu0 0
      %535 = vmatmul.mubr.bf16.gmra.mxu0 %v494
      %v536 = vpop.f32.mrf.mxu0
      %v537 = vadd.f32 0.0, %v536
      %v538 = vpop.f32.mrf.mxu0
      %v539 = vadd.f32 0.0, %v538
      %v540 = vpop.f32.mrf.mxu0
      %v541 = vadd.f32 0.0, %v540
      %v542 = vpop.f32.mrf.mxu0
      %v543 = vadd.f32 0.0, %v542
      %544 = vdwg.mxu0
      %v545 = vadd.f32 %v465, %v537
      %v546 = vadd.f32 %v466, %v539
      %v547 = vadd.f32 %v467, %v541
      %v548 = vadd.f32 %v468, %v543
      %v549 = vld [vmem:[%s165] sm:$0xf]
      %s550 = scalar_lea.vmem %s1, 40
      %v551 = vld [vmem:[%s550] sm:$0xf]
      %v552 = vld [vmem:[%s550 + $0x4] sm:$0x3]
      %v555 = vunpack.c.l.b16 %v551
      %v556 = vunpack.c.l.b16 %v552
      %v557 = vpack.c.b16 %v556, %v555
      %v560 = vunpack.c.l.s4 1983009808
      %v561 = vunpack.c.0.s8 %v560
      %v562 = vlaneseq
      %v563 = vshrl.u32 %v562, 7
      %v564 = vsub.s32 %v561, %v563
      %v565 = vrot.slane %v549, %v564
      %v566 = vcombine.high %v565, %v565
      %567 = vrot.lane.b32.xlu0 %v565, 110
      %v568 = vpop.permute.xlu0 %567
      %569 = vrot.lane.b32.xlu0 %v566, 110
      %v570 = vpop.permute.xlu0 %569
      %vm571 = vcmask 900096
      %v572 = vsel %vm571, %v568, %v570
      %v574 = vsel %vm198, %v557, 0
      %v577 = vsel %vm202, %v572, 0
      %v580 = vsel %vm202, %v570, 0
      %582 = vmatprep.subr.bf16.mxu0 0
      %583 = vmatpush1.bf16.msra.mxu0 0
      %584 = vmatprep.subr.bf16.mxu0 0
      %585 = vmatpush1.bf16.msra.mxu0 0
      %586 = vmatprep.subr.bf16.mxu0 0
      %587 = vmatpush1.bf16.msra.mxu0 0
      %588 = vmatprep.subr.bf16.mxu0 0
      %589 = vmatpush1.bf16.msra.mxu0 0
      %590 = vmatprep.subr.bf16.mxu0 0
      %591 = vmatpush1.bf16.msra.mxu0 0
      %592 = vmatprep.subr.bf16.mxu0 0
      %593 = vmatpush1.bf16.msra.mxu0 0
      %594 = vmatprep.subr.bf16.mxu0 0
      %595 = vmatpush1.bf16.msra.mxu0 0
      %596 = vmatprep.subr.bf16.mxu0 %v580
      %597 = vmatpush1.bf16.msra.mxu0 %v577
      %598 = vmatprep.subr.bf16.mxu0 0
      %599 = vmatpush2.bf16.msra.mxu0 0
      %600 = vmatprep.subr.bf16.mxu0 0
      %601 = vmatpush2.bf16.msra.mxu0 0
      %602 = vmatprep.subr.bf16.mxu0 0
      %603 = vmatpush2.bf16.msra.mxu0 0
      %604 = vmatprep.subr.bf16.mxu0 0
      %605 = vmatpush2.bf16.msra.mxu0 0
      %606 = vmatprep.subr.bf16.mxu0 0
      %607 = vmatpush2.bf16.msra.mxu0 0
      %608 = vmatprep.subr.bf16.mxu0 0
      %609 = vmatpush2.bf16.msra.mxu0 0
      %610 = vmatprep.subr.bf16.mxu0 0
      %611 = vmatpush2.bf16.msra.mxu0 0
      %612 = vmatprep.subr.bf16.mxu0 0
      %613 = vmatpush2.bf16.msra.mxu0 0
      %614 = vmatprep.mubr.bf16.mxu0 0
      %615 = vmatmul.mubr.bf16.gmra.mxu0 %v574
      %v616 = vpop.f32.mrf.mxu0
      %v617 = vadd.f32 0.0, %v616
      %v618 = vpop.f32.mrf.mxu0
      %v619 = vadd.f32 0.0, %v618
      %v620 = vpop.f32.mrf.mxu0
      %v621 = vadd.f32 0.0, %v620
      %v622 = vpop.f32.mrf.mxu0
      %v623 = vadd.f32 0.0, %v622
      %624 = vdwg.mxu0
      %v625 = vadd.f32 %v545, %v617
      %v626 = vadd.f32 %v546, %v619
      %v627 = vadd.f32 %v547, %v621
      %v628 = vadd.f32 %v548, %v623
      %v629 = vld [vmem:[%s165] sm:$0xf]
      %s630 = scalar_lea.vmem %s1, 48
      %v631 = vld [vmem:[%s630] sm:$0xf]
      %v632 = vld [vmem:[%s630 + $0x4] sm:$0x3]
      %v635 = vunpack.c.l.b16 %v631
      %v636 = vunpack.c.l.b16 %v632
      %v637 = vpack.c.b16 %v636, %v635
      %v640 = vunpack.c.l.s4 1983009808
      %v641 = vunpack.c.0.s8 %v640
      %v642 = vlaneseq
      %v643 = vshrl.u32 %v642, 7
      %v644 = vsub.s32 %v641, %v643
      %v645 = vrot.slane %v629, %v644
      %v646 = vcombine.high %v645, %v645
      %647 = vrot.lane.b32.xlu0 %v645, 96
      %v648 = vpop.permute.xlu0 %647
      %649 = vrot.lane.b32.xlu0 %v646, 96
      %v650 = vpop.permute.xlu0 %649
      %vm651 = vcmask 785408
      %v652 = vsel %vm651, %v648, %v650
      %v654 = vsel %vm198, %v637, 0
      %v657 = vsel %vm202, %v652, 0
      %v660 = vsel %vm202, %v650, 0
      %662 = vmatprep.subr.bf16.mxu0 0
      %663 = vmatpush1.bf16.msra.mxu0 0
      %664 = vmatprep.subr.bf16.mxu0 0
      %665 = vmatpush1.bf16.msra.mxu0 0
      %666 = vmatprep.subr.bf16.mxu0 0
      %667 = vmatpush1.bf16.msra.mxu0 0
      %668 = vmatprep.subr.bf16.mxu0 0
      %669 = vmatpush1.bf16.msra.mxu0 0
      %670 = vmatprep.subr.bf16.mxu0 0
      %671 = vmatpush1.bf16.msra.mxu0 0
      %672 = vmatprep.subr.bf16.mxu0 0
      %673 = vmatpush1.bf16.msra.mxu0 0
      %674 = vmatprep.subr.bf16.mxu0 0
      %675 = vmatpush1.bf16.msra.mxu0 0
      %676 = vmatprep.subr.bf16.mxu0 %v660
      %677 = vmatpush1.bf16.msra.mxu0 %v657
      %678 = vmatprep.subr.bf16.mxu0 0
      %679 = vmatpush2.bf16.msra.mxu0 0
      %680 = vmatprep.subr.bf16.mxu0 0
      %681 = vmatpush2.bf16.msra.mxu0 0
      %682 = vmatprep.subr.bf16.mxu0 0
      %683 = vmatpush2.bf16.msra.mxu0 0
      %684 = vmatprep.subr.bf16.mxu0 0
      %685 = vmatpush2.bf16.msra.mxu0 0
      %686 = vmatprep.subr.bf16.mxu0 0
      %687 = vmatpush2.bf16.msra.mxu0 0
      %688 = vmatprep.subr.bf16.mxu0 0
      %689 = vmatpush2.bf16.msra.mxu0 0
      %690 = vmatprep.subr.bf16.mxu0 0
      %691 = vmatpush2.bf16.msra.mxu0 0
      %692 = vmatprep.subr.bf16.mxu0 0
      %693 = vmatpush2.bf16.msra.mxu0 0
      %694 = vmatprep.mubr.bf16.mxu0 0
      %695 = vmatmul.mubr.bf16.gmra.mxu0 %v654
      %v696 = vpop.f32.mrf.mxu0
      %v697 = vadd.f32 0.0, %v696
      %v698 = vpop.f32.mrf.mxu0
      %v699 = vadd.f32 0.0, %v698
      %v700 = vpop.f32.mrf.mxu0
      %v701 = vadd.f32 0.0, %v700
      %v702 = vpop.f32.mrf.mxu0
      %v703 = vadd.f32 0.0, %v702
      %704 = vdwg.mxu0
      %v705 = vadd.f32 %v625, %v697
      %v706 = vadd.f32 %v626, %v699
      %v707 = vadd.f32 %v627, %v701
      %v708 = vadd.f32 %v628, %v703
      %v709 = vld [vmem:[%s165] sm:$0x3f]
      %s710 = scalar_lea.vmem %s1, 56
      %v711 = vld [vmem:[%s710] sm:$0xf]
      %v712 = vld [vmem:[%s710 + $0x4] sm:$0x3]
      %v715 = vunpack.c.l.b16 %v711
      %v716 = vunpack.c.l.b16 %v712
      %v717 = vpack.c.b16 %v716, %v715
      %v719 = vcombine.high %v709, %v709
      %v721 = vunpack.c.l.s4 1983009808
      %v722 = vunpack.c.0.s8 %v721
      %v723 = vlaneseq
      %v724 = vshrl.u32 %v723, 7
      %v725 = vsub.s32 %v722, %v724
      %v726 = vrot.slane %v709, %v725
      %v728 = vunpack.c.l.s4 1983009808
      %v729 = vunpack.c.0.s8 %v728
      %v730 = vlaneseq
      %v731 = vshrl.u32 %v730, 7
      %v732 = vsub.s32 %v729, %v731
      %v733 = vrot.slane %v719, %v732
      %v734 = vcombine.high %v726, %v726
      %735 = vrot.lane.b32.xlu0 %v726, 95
      %v736 = vpop.permute.xlu0 %735
      %737 = vrot.lane.b32.xlu0 %v734, 95
      %v738 = vpop.permute.xlu0 %737
      %739 = vrot.lane.b32.xlu0 %v733, 95
      %v740 = vpop.permute.xlu0 %739
      %vm741 = vcmask 777216
      %v742 = vsel %vm741, %v736, %v738
      %v743 = vsel %vm741, %v738, %v740
      %v745 = vsel %vm198, %v717, 0
      %v748 = vsel %vm202, %v742, 0
      %v751 = vsel %vm202, %v743, 0
      %753 = vmatprep.subr.bf16.mxu0 0
      %754 = vmatpush1.bf16.msra.mxu0 0
      %755 = vmatprep.subr.bf16.mxu0 0
      %756 = vmatpush1.bf16.msra.mxu0 0
      %757 = vmatprep.subr.bf16.mxu0 0
      %758 = vmatpush1.bf16.msra.mxu0 0
      %759 = vmatprep.subr.bf16.mxu0 0
      %760 = vmatpush1.bf16.msra.mxu0 0
      %761 = vmatprep.subr.bf16.mxu0 0
      %762 = vmatpush1.bf16.msra.mxu0 0
      %763 = vmatprep.subr.bf16.mxu0 0
      %764 = vmatpush1.bf16.msra.mxu0 0
      %765 = vmatprep.subr.bf16.mxu0 0
      %766 = vmatpush1.bf16.msra.mxu0 0
      %767 = vmatprep.subr.bf16.mxu0 %v751
      %768 = vmatpush1.bf16.msra.mxu0 %v748
      %769 = vmatprep.subr.bf16.mxu0 0
      %770 = vmatpush2.bf16.msra.mxu0 0
      %771 = vmatprep.subr.bf16.mxu0 0
      %772 = vmatpush2.bf16.msra.mxu0 0
      %773 = vmatprep.subr.bf16.mxu0 0
      %774 = vmatpush2.bf16.msra.mxu0 0
      %775 = vmatprep.subr.bf16.mxu0 0
      %776 = vmatpush2.bf16.msra.mxu0 0
      %777 = vmatprep.subr.bf16.mxu0 0
      %778 = vmatpush2.bf16.msra.mxu0 0
      %779 = vmatprep.subr.bf16.mxu0 0
      %780 = vmatpush2.bf16.msra.mxu0 0
      %781 = vmatprep.subr.bf16.mxu0 0
      %782 = vmatpush2.bf16.msra.mxu0 0
      %783 = vmatprep.subr.bf16.mxu0 0
      %784 = vmatpush2.bf16.msra.mxu0 0
      %785 = vmatprep.mubr.bf16.mxu0 0
      %786 = vmatmul.mubr.bf16.gmra.mxu0 %v745
      %v787 = vpop.f32.mrf.mxu0
      %v788 = vadd.f32 0.0, %v787
      %v789 = vpop.f32.mrf.mxu0
      %v790 = vadd.f32 0.0, %v789
      %v791 = vpop.f32.mrf.mxu0
      %v792 = vadd.f32 0.0, %v791
      %v793 = vpop.f32.mrf.mxu0
      %v794 = vadd.f32 0.0, %v793
      %795 = vdwg.mxu0
      %v796 = vadd.f32 %v705, %v788
      %v797 = vadd.f32 %v706, %v790
      %v798 = vadd.f32 %v707, %v792
      %v799 = vadd.f32 %v708, %v794
      %v800 = vld [vmem:[%s165] sm:$0x3f]
      %s801 = scalar_lea.vmem %s1, 64
      %v802 = vld [vmem:[%s801] sm:$0xf]
      %v803 = vld [vmem:[%s801 + $0x4] sm:$0x3]
      %v806 = vunpack.c.l.b16 %v802
      %v807 = vunpack.c.l.b16 %v803
      %v808 = vpack.c.b16 %v807, %v806
      %v810 = vcombine.high %v800, %v800
      %v812 = vunpack.c.l.s4 1983009808
      %v813 = vunpack.c.0.s8 %v812
      %v814 = vlaneseq
      %v815 = vshrl.u32 %v814, 7
      %v816 = vsub.s32 %v813, %v815
      %v817 = vrot.slane %v800, %v816
      %v819 = vunpack.c.l.s4 1983009808
      %v820 = vunpack.c.0.s8 %v819
      %v821 = vlaneseq
      %v822 = vshrl.u32 %v821, 7
      %v823 = vsub.s32 %v820, %v822
      %v824 = vrot.slane %v810, %v823
      %v825 = vcombine.high %v817, %v817
      %826 = vrot.lane.b32.xlu0 %v817, 94
      %v827 = vpop.permute.xlu0 %826
      %828 = vrot.lane.b32.xlu0 %v825, 94
      %v829 = vpop.permute.xlu0 %828
      %830 = vrot.lane.b32.xlu0 %v824, 94
      %v831 = vpop.permute.xlu0 %830
      %vm832 = vcmask 769024
      %v833 = vsel %vm832, %v827, %v829
      %v834 = vsel %vm832, %v829, %v831
      %v836 = vsel %vm198, %v808, 0
      %v839 = vsel %vm202, %v833, 0
      %v842 = vsel %vm202, %v834, 0
      %844 = vmatprep.subr.bf16.mxu0 0
      %845 = vmatpush1.bf16.msra.mxu0 0
      %846 = vmatprep.subr.bf16.mxu0 0
      %847 = vmatpush1.bf16.msra.mxu0 0
      %848 = vmatprep.subr.bf16.mxu0 0
      %849 = vmatpush1.bf16.msra.mxu0 0
      %850 = vmatprep.subr.bf16.mxu0 0
      %851 = vmatpush1.bf16.msra.mxu0 0
      %852 = vmatprep.subr.bf16.mxu0 0
      %853 = vmatpush1.bf16.msra.mxu0 0
      %854 = vmatprep.subr.bf16.mxu0 0
      %855 = vmatpush1.bf16.msra.mxu0 0
      %856 = vmatprep.subr.bf16.mxu0 0
      %857 = vmatpush1.bf16.msra.mxu0 0
      %858 = vmatprep.subr.bf16.mxu0 %v842
      %859 = vmatpush1.bf16.msra.mxu0 %v839
      %860 = vmatprep.subr.bf16.mxu0 0
      %861 = vmatpush2.bf16.msra.mxu0 0
      %862 = vmatprep.subr.bf16.mxu0 0
      %863 = vmatpush2.bf16.msra.mxu0 0
      %864 = vmatprep.subr.bf16.mxu0 0
      %865 = vmatpush2.bf16.msra.mxu0 0
      %866 = vmatprep.subr.bf16.mxu0 0
      %867 = vmatpush2.bf16.msra.mxu0 0
      %868 = vmatprep.subr.bf16.mxu0 0
      %869 = vmatpush2.bf16.msra.mxu0 0
      %870 = vmatprep.subr.bf16.mxu0 0
      %871 = vmatpush2.bf16.msra.mxu0 0
      %872 = vmatprep.subr.bf16.mxu0 0
      %873 = vmatpush2.bf16.msra.mxu0 0
      %874 = vmatprep.subr.bf16.mxu0 0
      %875 = vmatpush2.bf16.msra.mxu0 0
      %876 = vmatprep.mubr.bf16.mxu0 0
      %877 = vmatmul.mubr.bf16.gmra.mxu0 %v836
      %v878 = vpop.f32.mrf.mxu0
      %v879 = vadd.f32 0.0, %v878
      %v880 = vpop.f32.mrf.mxu0
      %v881 = vadd.f32 0.0, %v880
      %v882 = vpop.f32.mrf.mxu0
      %v883 = vadd.f32 0.0, %v882
      %v884 = vpop.f32.mrf.mxu0
      %v885 = vadd.f32 0.0, %v884
      %886 = vdwg.mxu0
      %v887 = vadd.f32 %v796, %v879
      %v888 = vadd.f32 %v797, %v881
      %v889 = vadd.f32 %v798, %v883
      %v890 = vadd.f32 %v799, %v885
      %v891 = vld [vmem:[%s2] sm:$0xff]
      %v892 = vld [vmem:[%s2 + $0x8] sm:$0xf]
      %894 = vset.pattern.permute.xlu0 0
      %895 = vperm.xlu0 %894, %v891
      %v896 = vpop.permute.xlu0 %895
      %899 = vset.pattern.permute.xlu0 0
      %900 = vperm.xlu0 %899, %v892
      %v901 = vpop.permute.xlu0 %900
      %v903 = vadd.f32 %v887, %v896
      %v904 = vadd.f32 %v888, %v896
      %v905 = vadd.f32 %v889, %v901
      %v906 = vadd.f32 %v890, %v901
      %v907 = vlaneseq
      %v908 = vshrl.u32 %v907, 7
      %v909 = vadd.s32 %v908, 8
      %vm910 = vcmp.lt.s32.totalorder %v908, 3
      %vm911 = vcmp.lt.s32.totalorder %v909, 3
      %vm912 = vcmp.ge.s32.totalorder %v908, 6
      %vm913 = vcmp.ge.s32.totalorder %v909, 6
      %vm914 = vcmp.lt.s32.totalorder %v908, 9
      %vm915 = vcmp.lt.s32.totalorder %v909, 9
      %vm916 = vmand %vm912, %vm914
      %vm917 = vmand %vm913, %vm915
      %v918 = vmax.f32 %v903, 0.0
      %v919 = vmax.f32 %v904, 0.0
      %v920 = vmax.f32 %v905, 0.0
      %v921 = vmax.f32 %v906, 0.0
      %v922 = vand.u32 2147483647, %v903
      %v923 = vand.u32 2147483647, %v904
      %v924 = vand.u32 2147483647, %v905
      %v925 = vand.u32 2147483647, %v906
      %v926 = vsub.f32 0.0, %v922
      %v927 = vsub.f32 0.0, %v923
      %v928 = vsub.f32 0.0, %v924
      %v929 = vsub.f32 0.0, %v925
      %v930 = vmul.f32 %v926, 1.442695
      %v931 = vpow.pop %v930
      %v932 = vmul.f32 %v927, 1.442695
      %v933 = vpow.pop %v932
      %v934 = vmul.f32 %v928, 1.442695
      %v935 = vpow.pop %v934
      %v936 = vmul.f32 %v929, 1.442695
      %v937 = vpow.pop %v936
      %v938 = vadd.f32 %v931, 1.0
      %v939 = vlog2.pop %v938
      %v940 = vmul.f32 %v939, 0.6931472
      %v941 = vmul.f32 -0.5, %v931
      %v942 = vadd.f32 %v941, 1.0
      %v943 = vmul.f32 %v942, %v931
      %v944 = vand.u32 2147483647, %v931
      %vm945 = vcmp.lt.f32.partialorder %v944, 0.0004427343
      %v946 = vsel %vm945, %v943, %v940
      %v947 = vadd.f32 %v933, 1.0
      %v948 = vlog2.pop %v947
      %v949 = vmul.f32 %v948, 0.6931472
      %v950 = vmul.f32 -0.5, %v933
      %v951 = vadd.f32 %v950, 1.0
      %v952 = vmul.f32 %v951, %v933
      %v953 = vand.u32 2147483647, %v933
      %vm954 = vcmp.lt.f32.partialorder %v953, 0.0004427343
      %v955 = vsel %vm954, %v952, %v949
      %v956 = vadd.f32 %v935, 1.0
      %v957 = vlog2.pop %v956
      %v958 = vmul.f32 %v957, 0.6931472
      %v959 = vmul.f32 -0.5, %v935
      %v960 = vadd.f32 %v959, 1.0
      %v961 = vmul.f32 %v960, %v935
      %v962 = vand.u32 2147483647, %v935
      %vm963 = vcmp.lt.f32.partialorder %v962, 0.0004427343
      %v964 = vsel %vm963, %v961, %v958
      %v965 = vadd.f32 %v937, 1.0
      %v966 = vlog2.pop %v965
      %v967 = vmul.f32 %v966, 0.6931472
      %v968 = vmul.f32 -0.5, %v937
      %v969 = vadd.f32 %v968, 1.0
      %v970 = vmul.f32 %v969, %v937
      %v971 = vand.u32 2147483647, %v937
      %vm972 = vcmp.lt.f32.partialorder %v971, 0.0004427343
      %v973 = vsel %vm972, %v970, %v967
      %v974 = vadd.f32 %v918, %v946
      %v975 = vadd.f32 %v919, %v955
      %v976 = vadd.f32 %v920, %v964
      %v977 = vadd.f32 %v921, %v973
      %v978 = vsel %vm916, 1, 0
      %v979 = vsel %vm917, 1, 0
      %v980 = vcvt.s32.f32 %v978
      %v981 = vcvt.s32.f32 %v979
      %v982 = vadd.f32 %v974, %v980
      %v983 = vadd.f32 %v975, %v980
      %v984 = vadd.f32 %v976, %v981
      %v985 = vadd.f32 %v977, %v981
      %v986 = vsel %vm910, %v903, %v982
      %v987 = vsel %vm910, %v904, %v983
      %v988 = vsel %vm911, %v905, %v984
      %v989 = vsel %vm911, %v906, %v985
      %990 = vst [vmem:[%s170] sm:$0xff] %v986
      %vm991 = vcmask 785408
      %992 = vst.msk [vmem:[%s170 + $0x8] sm:$0xff] %vm991, %v987
      %993 = vst [vmem:[%s170 + $0x10] sm:$0xf] %v988
      %vm994 = vcmask 781312
      %995 = vst.msk [vmem:[%s170 + $0x18] sm:$0xf] %vm994, %v989
      %p996 = scmp.lt.s32.totalorder %s14, 1
      %s997 = scalar_select %p996, %s14, 1
      %s998 = smul.addr %s997, 4
      %s999 = smul.addr %s998, 8
      %s1000 = scalar_lea.vmem %s3, %s999
      // Predicated region
      $region33: #{conv2d_normal_gamma.1} parent=31 // pred_check
        %p1001 = pneg %p100
      $region34: #{conv2d_normal_gamma.1} parent=31 // pred_check_branch
        %1003 = sbr.rel (%p1001) target = $region36
      $region35: #{conv2d_normal_gamma.1} parent=31 // pred_region
        _
      $region36: #{conv2d_normal_gamma.1} parent=31 // pred_fallthru
        _
    $region32: #{conv2d_normal_gamma.1} parent=5 // pred_fallthru
      _
    %p1004 = scmp.le.s32.totalorder 2, %s9
    // Predicated region
    $region37: #{conv2d_normal_gamma.1} parent=5 // pred_check
      %p1005 = pneg %p1004
    $region38: #{conv2d_normal_gamma.1} parent=5 // pred_check_branch
      %1007 = sbr.rel (%p1005) target = $region40
    $region39: #{conv2d_normal_gamma.1} parent=5 // pred_region
      %s1008 = ssub.s32 %s9, 2
      // Predicated region
      $region41: #{conv2d_normal_gamma.1} parent=39 // pred_check
        %p1009 = pneg %p106
      $region42: #{conv2d_normal_gamma.1} parent=39 // pred_check_branch
        %1011 = sbr.rel (%p1009) target = $region44
      $region43: #{conv2d_normal_gamma.1} parent=39 // pred_region
        %p1012 = scmp.lt.s32.totalorder %s15, 1
        %s1013 = scalar_select %p1012, %s15, 1
        %s1014 = smul.addr %s1013, 4
        %s1015 = smul.addr %s1014, 8
        %s1016 = scalar_lea.vmem %s3, %s1015
      $region44: #{conv2d_normal_gamma.1} parent=39 // pred_fallthru
        _
    $region40: #{conv2d_normal_gamma.1} parent=5 // pred_fallthru
      _
  $region6: #{conv2d_normal_gamma.1} parent=0 // loop_footer
    %s13 = sadd.s32 1, %s9
  $region7: #{conv2d_normal_gamma.1} parent=0 // loop_footer_branch
    %8 = sbr.rel target = $region3
  $region8: #{conv2d_normal_gamma.1} parent=0 // loop_exit
    _

</llo_original>
